<compile_context>
chip_gen: v7x
topology: tpu7x:2x2x1
jax: 0.10.0
libtpu: 0.0.40
codegen_flags: <defaults>
</compile_context>

<pallas_src>
import functools

import jax
import jax.numpy as jnp
from jax.experimental import pallas as pl
from jax.experimental.pallas import tpu as pltpu

_PAIRWISE_EPS = 1e-6  # matches torch.nn.functional.pairwise_distance default


def _choose_block_b(B, D, itemsize, target_tile_bytes=4 * 1024 * 1024):
    """Pick a batch tile: multiple of 8 sublanes, ~4 MiB per input tile."""
    if B <= 8:
        return B  # full-dim block is always legal
    rows = target_tile_bytes // max(D * itemsize, 1)
    rows = max(8, min(rows, B))
    return int((rows // 8) * 8)


def _triplet_kernel(q_ref, p_ref, n_ref, out_ref, *, margin, block_b, total_b):
    i = pl.program_id(0)

    q = q_ref[...].astype(jnp.float32)
    p = p_ref[...].astype(jnp.float32)
    n = n_ref[...].astype(jnp.float32)

    # pairwise L2 distance with torch's eps added to the difference
    diff_pos = q - p + _PAIRWISE_EPS
    diff_neg = q - n + _PAIRWISE_EPS
    d_pos = jnp.sqrt(jnp.sum(diff_pos * diff_pos, axis=-1, keepdims=True))  # [block_b, 1]
    d_neg = jnp.sqrt(jnp.sum(diff_neg * diff_neg, axis=-1, keepdims=True))  # [block_b, 1]

    losses = jnp.maximum(d_pos - d_neg + margin, 0.0)                       # [block_b, 1]

    has_tail = (total_b % block_b) != 0  # static: mask code only emitted if needed
    if not has_tail:
        out_ref[...] = jnp.sum(losses, axis=0, keepdims=True)[None]         # (1,1,1)
    else:
        last = pl.num_programs(0) - 1

        @pl.when(i != last)
        def _():
            out_ref[...] = jnp.sum(losses, axis=0, keepdims=True)[None]

        @pl.when(i == last)
        def _():
            # Zero the rows past the true batch (tail block padding is
            # unspecified data; where() keeps any garbage out of the sum).
            row_ids = i * block_b + jax.lax.broadcasted_iota(
                jnp.int32, (block_b, 1), 0)
            masked = jnp.where(row_ids < total_b, losses, 0.0)
            out_ref[...] = jnp.sum(masked, axis=0, keepdims=True)[None]


def triplet_cosine_similarity_loss(query, pos, neg, *, margin=0.5,
                                   temperature=1.0, block_b=None):
    """Pallas TPU version of TripletCosineSimilarity.forward.

    query, pos, neg: [B, D] embeddings (pass them in their native dtype, e.g.
    bf16 — the kernel upcasts to f32 internally). Returns a scalar f32 loss.
    `temperature` is kept for API parity; the PyTorch forward never uses it.
    """
    del temperature  # unused by the reference forward pass
    # TODO(synk): the optional `mask` argument of the PyTorch forward is never
    # used by the reference implementation, so it is not implemented here.
    B, D = query.shape
    assert pos.shape == (B, D) and neg.shape == (B, D)

    itemsize = jnp.dtype(query.dtype).itemsize
    if block_b is None:
        block_b = _choose_block_b(B, D, itemsize)
    assert block_b == B or (block_b > 0 and block_b % 8 == 0)
    # TODO(synk): for extremely large D (per-row tile >> VMEM) a reduction axis
    # over D (running sum-of-squares) would be needed.

    num_blocks = pl.cdiv(B, block_b)

    in_spec = pl.BlockSpec((block_b, D), lambda i: (i, 0))
    # (1,1,1) per-block scalar output; last two dims equal full array dims so
    # the (8,128) block constraint is satisfied.
    out_spec = pl.BlockSpec((1, 1, 1), lambda i: (i, 0, 0))

    # 3 inputs x 2 pipeline buffers per tile; keep the scoped-VMEM limit
    # explicit (v5e default is only 16 MiB) and capped well below v7x's
    # 64 MiB physical VMEM to leave Mosaic internal scratch headroom.
    dbuf_bytes = 3 * 2 * block_b * D * itemsize
    vmem_limit = int(min(48 * 1024 * 1024,
                         max(32 * 1024 * 1024, dbuf_bytes + 8 * 1024 * 1024)))

    kernel = functools.partial(_triplet_kernel, margin=float(margin),
                               block_b=block_b, total_b=B)

    cost = pl.CostEstimate(
        flops=int(8 * B * D),
        transcendentals=int(2 * B),
        bytes_accessed=int(3 * B * D * itemsize + num_blocks * 4),
    )

    partials = pl.pallas_call(
        kernel,
        out_shape=jax.ShapeDtypeStruct((num_blocks, 1, 1), jnp.float32),
        grid_spec=pltpu.PrefetchScalarGridSpec(
            num_scalar_prefetch=0,
            grid=(num_blocks,),
            in_specs=[in_spec, in_spec, in_spec],
            out_specs=out_spec,
        ),
        compiler_params=pltpu.CompilerParams(
            dimension_semantics=("parallel",),
            vmem_limit_bytes=vmem_limit),
        cost_estimate=cost,
    )(query, pos, neg)

    # Final (tiny) scalar reduction + mean outside the kernel.
    return jnp.sum(partials) / jnp.float32(B)


def _reference(query, pos, neg, margin=0.5):
    q = query.astype(jnp.float32)
    p = pos.astype(jnp.float32)
    n = neg.astype(jnp.float32)
    d_pos = jnp.sqrt(jnp.sum((q - p + _PAIRWISE_EPS) ** 2, axis=-1))
    d_neg = jnp.sqrt(jnp.sum((q - n + _PAIRWISE_EPS) ** 2, axis=-1))
    return jnp.mean(jnp.maximum(d_pos - d_neg + margin, 0.0))


if __name__ == "__main__":
    key = jax.random.PRNGKey(0)

    # 1) small f32 case (single tile, B < 8 allowed via full-dim block)
    k1, k2, k3 = jax.random.split(key, 3)
    B, D = 8, 32
    q = jax.random.normal(k1, (B, D), dtype=jnp.float32)
    p = jax.random.normal(k2, (B, D), dtype=jnp.float32)
    n = jax.random.normal(k3, (B, D), dtype=jnp.float32)
    loss = jax.block_until_ready(triplet_cosine_similarity_loss(q, p, n, margin=0.5))
    ref = _reference(q, p, n, margin=0.5)
    assert jnp.allclose(loss, ref, atol=1e-5, rtol=1e-5), (loss, ref)

    # 2) ragged batch + forced small tile: exercises the masked tail block and
    #    the multi-block parallel grid with per-block scalar outputs.
    k4, k5, k6 = jax.random.split(jax.random.PRNGKey(1), 3)
    B2, D2 = 20, 64
    q2 = jax.random.normal(k4, (B2, D2), dtype=jnp.float32)
    p2 = jax.random.normal(k5, (B2, D2), dtype=jnp.float32)
    n2 = jax.random.normal(k6, (B2, D2), dtype=jnp.float32)
    loss2 = jax.block_until_ready(
        triplet_cosine_similarity_loss(q2, p2, n2, margin=0.5, block_b=8))
    ref2 = _reference(q2, p2, n2, margin=0.5)
    assert jnp.allclose(loss2, ref2, atol=1e-5, rtol=1e-5), (loss2, ref2)

    # 3) bf16 inputs stay bf16 through the DMA (halved HBM traffic).
    k7, k8, k9 = jax.random.split(jax.random.PRNGKey(2), 3)
    B3, D3 = 16, 128
    q3 = jax.random.normal(k7, (B3, D3), dtype=jnp.bfloat16)
    p3 = jax.random.normal(k8, (B3, D3), dtype=jnp.bfloat16)
    n3 = jax.random.normal(k9, (B3, D3), dtype=jnp.bfloat16)
    loss3 = jax.block_until_ready(
        triplet_cosine_similarity_loss(q3, p3, n3, margin=0.5))
    ref3 = _reference(q3, p3, n3, margin=0.5)
    assert jnp.allclose(loss3, ref3, atol=1e-5, rtol=1e-5), (loss3, ref3)

    print("KERNEL_OK")
</pallas_src>

<mosaic_0001>
module attributes {stable_mosaic.version = 11 : i64} {
  func.func @_triplet_kernel(%arg0: i32, %arg1: memref<8x32xf32, #tpu.memory_space<vmem>>, %arg2: memref<8x32xf32, #tpu.memory_space<vmem>>, %arg3: memref<8x32xf32, #tpu.memory_space<vmem>>, %arg4: memref<1x1x1xf32, #tpu.memory_space<vmem>>) attributes {dimension_semantics = [#tpu.dimension_semantics<parallel>], iteration_bounds = array<i64: 1>, scalar_prefetch = 0 : i64, scratch_operands = 0 : i64, tpu.core_type = #tpu.core_type<tc>, window_params = [{transform_indices = @transform_0, window_bounds = array<i64: 8, 32>}, {transform_indices = @transform_1, window_bounds = array<i64: 8, 32>}, {transform_indices = @transform_2, window_bounds = array<i64: 8, 32>}, {transform_indices = @transform_3, window_bounds = array<i64: 1, 1, 1>}]} {
    %c0 = arith.constant 0 : index
    %c0_0 = arith.constant 0 : index
    %0 = vector.load %arg1[%c0, %c0_0] : memref<8x32xf32, #tpu.memory_space<vmem>>, vector<8x32xf32>
    %c0_1 = arith.constant 0 : index
    %c0_2 = arith.constant 0 : index
    %1 = vector.load %arg2[%c0_1, %c0_2] : memref<8x32xf32, #tpu.memory_space<vmem>>, vector<8x32xf32>
    %c0_3 = arith.constant 0 : index
    %c0_4 = arith.constant 0 : index
    %2 = vector.load %arg3[%c0_3, %c0_4] : memref<8x32xf32, #tpu.memory_space<vmem>>, vector<8x32xf32>
    %3 = arith.subf %0, %1 : vector<8x32xf32>
    %cst = arith.constant 9.99999997E-7 : f32
    %4 = vector.broadcast %cst : f32 to vector<8x32xf32>
    %5 = arith.addf %3, %4 : vector<8x32xf32>
    %6 = arith.subf %0, %2 : vector<8x32xf32>
    %cst_5 = arith.constant 9.99999997E-7 : f32
    %7 = vector.broadcast %cst_5 : f32 to vector<8x32xf32>
    %8 = arith.addf %6, %7 : vector<8x32xf32>
    %9 = arith.mulf %5, %5 : vector<8x32xf32>
    %cst_6 = arith.constant dense<0.000000e+00> : vector<8xf32>
    %10 = vector.multi_reduction <add>, %9, %cst_6 [1] : vector<8x32xf32> to vector<8xf32>
    %11 = vector.shape_cast %10 : vector<8xf32> to vector<8x1xf32>
    %12 = math.sqrt %11 : vector<8x1xf32>
    %13 = arith.mulf %8, %8 : vector<8x32xf32>
    %cst_7 = arith.constant dense<0.000000e+00> : vector<8xf32>
    %14 = vector.multi_reduction <add>, %13, %cst_7 [1] : vector<8x32xf32> to vector<8xf32>
    %15 = vector.shape_cast %14 : vector<8xf32> to vector<8x1xf32>
    %16 = math.sqrt %15 : vector<8x1xf32>
    %17 = arith.subf %12, %16 : vector<8x1xf32>
    %cst_8 = arith.constant 5.000000e-01 : f32
    %18 = vector.broadcast %cst_8 : f32 to vector<8x1xf32>
    %19 = arith.addf %17, %18 : vector<8x1xf32>
    %cst_9 = arith.constant 0.000000e+00 : f32
    %20 = vector.broadcast %cst_9 : f32 to vector<8x1xf32>
    %21 = arith.maximumf %19, %20 : vector<8x1xf32>
    %cst_10 = arith.constant dense<0.000000e+00> : vector<1xf32>
    %22 = vector.multi_reduction <add>, %21, %cst_10 [0] : vector<8x1xf32> to vector<1xf32>
    %23 = vector.shape_cast %22 : vector<1xf32> to vector<1x1xf32>
    %24 = vector.shape_cast %23 : vector<1x1xf32> to vector<1x1x1xf32>
    %c0_11 = arith.constant 0 : index
    %c0_12 = arith.constant 0 : index
    %c0_13 = arith.constant 0 : index
    %25 = vector.load %arg4[%c0_11, %c0_12, %c0_13] : memref<1x1x1xf32, #tpu.memory_space<vmem>>, vector<1x1x1xf32>
    tpu.vector_store %arg4[%c0_11, %c0_12, %c0_13], %24 {strides = array<i32>} : memref<1x1x1xf32, #tpu.memory_space<vmem>>, vector<1x1x1xf32>,
    return
  }
  func.func @transform_0(%arg0: i32) -> (i32, i32) {
    %c0_i32 = arith.constant 0 : i32
    %c0_i32_0 = arith.constant 0 : i32
    return %arg0, %c0_i32 : i32, i32
  }
  func.func @transform_1(%arg0: i32) -> (i32, i32) {
    %c0_i32 = arith.constant 0 : i32
    %c0_i32_0 = arith.constant 0 : i32
    return %arg0, %c0_i32 : i32, i32
  }
  func.func @transform_2(%arg0: i32) -> (i32, i32) {
    %c0_i32 = arith.constant 0 : i32
    %c0_i32_0 = arith.constant 0 : i32
    return %arg0, %c0_i32 : i32, i32
  }
  func.func @transform_3(%arg0: i32) -> (i32, i32, i32) {
    %c0_i32 = arith.constant 0 : i32
    %c0_i32_0 = arith.constant 0 : i32
    %c0_i32_1 = arith.constant 0 : i32
    return %arg0, %c0_i32, %c0_i32_0 : i32, i32, i32
  }
}

</mosaic_0001>

<llo_original>
// kernel: tpu_custom_call.1
$region0: #{tpu_custom_call.1}
  #allocation0 [shape = 'u32[]', space=smem, size = 0x4, offset = 0x4, fixed_abs, tag = 'smem constant byte address 0x4 - core index']
  #allocation1 [shape = 'u32[144,128]{1,0:T(1,128)}', space=vmem, size = 0x12000, scoped, tag = 'internal scratch']
  %s0 = inlined_call_operand.hbm [shape: f32[8,32], index: 0, kind: input, shape index: {}]
  %s1 = inlined_call_operand.hbm [shape: f32[8,32], index: 1, kind: input, shape index: {}]
  %s2 = inlined_call_operand.hbm [shape: f32[8,32], index: 2, kind: input, shape index: {}]
  %s3 = inlined_call_operand.hbm [shape: f32[1,1,1], index: 3, kind: output, shape index: {}]
  %s4 = sld [smem:[#allocation0]]
  $region34: #{tpu_custom_call.1} parent=0
    _
  %s6 = ssub.s32 1, %s4
  %s7 = scalar_select 0, %s6, %s4
  $region1: #{tpu_custom_call.1} parent=0
    #allocation2 [shape = 'u8[4096]{0}', space=vmem, size = 0x1000, scoped, tag = 'input window, operand 0, single buffered']
    #allocation3 [shape = 's32[1]{0}', space=sflag, size = 0x4, scoped, tag = 'scoped memory for tpu_custom_call.1']
    #allocation4 [shape = 's32[1]{0}', space=sflag, size = 0x4, scoped, tag = 'scoped memory for tpu_custom_call.1']
    #allocation5 [shape = 'u8[4096]{0}', space=vmem, size = 0x1000, scoped, tag = 'input window, operand 1, single buffered']
    #allocation6 [shape = 's32[1]{0}', space=sflag, size = 0x4, scoped, tag = 'scoped memory for tpu_custom_call.1']
    #allocation7 [shape = 'u8[4096]{0}', space=vmem, size = 0x1000, scoped, tag = 'input window, operand 2, single buffered']
    #allocation8 [shape = 'u8[512]{0}', space=vmem, size = 0x400, scoped, tag = 'output window, operand 0, single buffered']
    %8 = vsyncpa [#allocation3], 0
    %9 = vsyncpa [#allocation6], 0
    %10 = vsyncpa [#allocation4], 0
    // Predicated region
    $region2: #{tpu_custom_call.1} parent=1 // pred_check
      _
    $region3: #{tpu_custom_call.1} parent=1 // pred_check_branch
      %12 = sbr.rel (0) target = $region5
    $region4: #{tpu_custom_call.1} parent=1 // pred_region
      %s14 = ssub.s32 128, 128
      %15 = vsyncadd [#allocation3], %s14
      %s17 = sshll.u32 [#allocation2], 4
      %s18 = int_to_ptr.vmem [resolvable:$true] %s17
      %20 = dma.hbm_to_vmem [thread:$0]  %s0, 128, %s18, [#allocation3]
    $region5: #{tpu_custom_call.1} parent=1 // pred_fallthru
      _
    // Predicated region
    $region6: #{tpu_custom_call.1} parent=1 // pred_check
      _
    $region7: #{tpu_custom_call.1} parent=1 // pred_check_branch
      %22 = sbr.rel (0) target = $region9
    $region8: #{tpu_custom_call.1} parent=1 // pred_region
      %s24 = ssub.s32 128, 128
      %25 = vsyncadd [#allocation6], %s24
      %s27 = sshll.u32 [#allocation5], 4
      %s28 = int_to_ptr.vmem [resolvable:$true] %s27
      %30 = dma.hbm_to_vmem [thread:$0]  %s1, 128, %s28, [#allocation6]
    $region9: #{tpu_custom_call.1} parent=1 // pred_fallthru
      _
    // Predicated region
    $region10: #{tpu_custom_call.1} parent=1 // pred_check
      _
    $region11: #{tpu_custom_call.1} parent=1 // pred_check_branch
      %32 = sbr.rel (0) target = $region13
    $region12: #{tpu_custom_call.1} parent=1 // pred_region
      %s34 = ssub.s32 128, 128
      %35 = vsyncadd [#allocation6], %s34
      %s37 = sshll.u32 [#allocation7], 4
      %s38 = int_to_ptr.vmem [resolvable:$true] %s37
      %40 = dma.hbm_to_vmem [thread:$0]  %s2, 128, %s38, [#allocation6]
    $region13: #{tpu_custom_call.1} parent=1 // pred_fallthru
      _
    // Predicated region
    $region14: #{tpu_custom_call.1} parent=1 // pred_check
      _
    $region15: #{tpu_custom_call.1} parent=1 // pred_check_branch
      %42 = sbr.rel (0) target = $region17
    $region16: #{tpu_custom_call.1} parent=1 // pred_region
      %43 = dma.done [#allocation3], 128
    $region17: #{tpu_custom_call.1} parent=1 // pred_fallthru
      _
    // Predicated region
    $region18: #{tpu_custom_call.1} parent=1 // pred_check
      _
    $region19: #{tpu_custom_call.1} parent=1 // pred_check_branch
      %45 = sbr.rel (0) target = $region21
    $region20: #{tpu_custom_call.1} parent=1 // pred_region
      %46 = dma.done [#allocation6], 128
    $region21: #{tpu_custom_call.1} parent=1 // pred_fallthru
      _
    // Predicated region
    $region22: #{tpu_custom_call.1} parent=1 // pred_check
      _
    $region23: #{tpu_custom_call.1} parent=1 // pred_check_branch
      %48 = sbr.rel (0) target = $region25
    $region24: #{tpu_custom_call.1} parent=1 // pred_region
      %49 = dma.done [#allocation6], 128
    $region25: #{tpu_custom_call.1} parent=1 // pred_fallthru
      _
    %v50 = vld [vmem:[#allocation2] sm:$0xff]
    %v51 = vld [vmem:[#allocation5] sm:$0xff]
    %v52 = vld [vmem:[#allocation7] sm:$0xff]
    %v53 = vsub.f32 %v50, %v51
    %v54 = vadd.f32 %v53, 1e-06
    %v55 = vsub.f32 %v50, %v52
    %v56 = vadd.f32 %v55, 1e-06
    %v57 = vmul.f32 %v54, %v54
    %vm58 = vcmask 261120
    %v59 = vsel %vm58, %v57, 0.0
    %60 = vadd.xlane.f32.xlu0 %v59
    %v61 = vpop.xlane.xlu0 %60
    %v62 = vrsqrt.pop %v61
    %v63 = vmul.f32 %v61, %v62
    %vm64 = vcmp.eq.f32.partialorder %v61, inf
    %v65 = vsel %vm64, %v61, %v63
    %vm66 = vcmp.eq.f32.partialorder %v61, 0.0
    %v67 = vand.u32 %v61, 2147483648
    %v68 = vsel %vm66, %v67, %v65
    %v69 = vmul.f32 %v56, %v56
    %v70 = vsel %vm58, %v69, 0.0
    %71 = vadd.xlane.f32.xlu0 %v70
    %v72 = vpop.xlane.xlu0 %71
    %v73 = vrsqrt.pop %v72
    %v74 = vmul.f32 %v72, %v73
    %vm75 = vcmp.eq.f32.partialorder %v72, inf
    %v76 = vsel %vm75, %v72, %v74
    %vm77 = vcmp.eq.f32.partialorder %v72, 0.0
    %v78 = vand.u32 %v72, 2147483648
    %v79 = vsel %vm77, %v78, %v76
    %v80 = vsub.f32 %v68, %v79
    %v81 = vadd.f32 %v80, 0.5
    %v82 = vmax.f32 %v81, 0.0
    %v83 = vrot.slane %v82, 4
    %v84 = vadd.f32 %v82, %v83
    %v85 = vrot.slane %v84, 2
    %v86 = vadd.f32 %v84, %v85
    %v87 = vrot.slane %v86, 1
    %v88 = vadd.f32 %v86, %v87
    %vm89 = vcmask 0
    %90 = vst.msk [vmem:[#allocation8] sm:$0x1] %vm89, %v88
    // Predicated region
    $region26: #{tpu_custom_call.1} parent=1 // pred_check
      _
    $region27: #{tpu_custom_call.1} parent=1 // pred_check_branch
      %92 = sbr.rel (0) target = $region29
    $region28: #{tpu_custom_call.1} parent=1 // pred_region
      %s94 = ssub.s32 16, 16
      %95 = vsyncadd [#allocation4], %s94
      %s97 = sshll.u32 [#allocation8], 4
      %s98 = int_to_ptr.vmem [resolvable:$true] %s97
      %100 = dma.vmem_to_hbm [thread:$0]  %s98, 16, %s3, [#allocation4]
    $region29: #{tpu_custom_call.1} parent=1 // pred_fallthru
      _
    // Predicated region
    $region30: #{tpu_custom_call.1} parent=1 // pred_check
      _
    $region31: #{tpu_custom_call.1} parent=1 // pred_check_branch
      %102 = sbr.rel (0) target = $region33
    $region32: #{tpu_custom_call.1} parent=1 // pred_region
      %103 = dma.done [#allocation4], 16
    $region33: #{tpu_custom_call.1} parent=1 // pred_fallthru
      _
    %104 = vsyncpa [#allocation3], 1
    %105 = vsyncpa [#allocation6], 1
    %106 = vsyncpa [#allocation4], 1

</llo_original>
